<compile_context>
chip_gen: v7x
topology: tpu7x:2x2x1
jax: 0.10.0
libtpu: 0.0.40
codegen_flags: <defaults>
</compile_context>

<pallas_src>
import functools

import jax
import jax.numpy as jnp
from jax import lax
from jax.experimental import pallas as pl
from jax.experimental.pallas import tpu as pltpu

LANES = 128            # lane tile (fast axis)
SUBLANE = 8            # sublane alignment unit
MAX_BLOCK_ROWS = 2048  # 2048*128*4B = 1 MiB per buffer -> safe on v5e/v6e/v7x


def _fmix32(x):
    """murmur3 32-bit finalizer (good avalanche, pure VPU integer ops)."""
    x = x ^ (x >> 16)
    x = x * jnp.uint32(0x85EBCA6B)
    x = x ^ (x >> 13)
    x = x * jnp.uint32(0xC2B2AE35)
    x = x ^ (x >> 16)
    return x


def _bits_to_unit(bits):
    """uint32 bits -> f32 uniform in [0, 1) via the exponent-bit trick
    (no int->float convert, no scale multiply)."""
    f = lax.bitcast_convert_type((bits >> 9) | jnp.uint32(0x3F800000), jnp.float32)
    return f - 1.0


def _noise_kernel(seed_ref, x_ref, o_ref, *, sigma):
    rows, lanes = x_ref.shape          # static block shape
    half = rows // 2                   # rows is a multiple of 8 -> even
    pid = pl.program_id(0)

    # Global linear index of each Box-Muller pair handled by this block.
    row = lax.broadcasted_iota(jnp.int32, (half, lanes), 0)
    col = lax.broadcasted_iota(jnp.int32, (half, lanes), 1)
    pair = ((pid * half + row) * lanes + col).astype(jnp.uint32)

    # Mix the call seed non-linearly with the element counter so different
    # (seed, block) combinations give decorrelated streams.
    key = seed_ref[0].astype(jnp.uint32) * jnp.uint32(0x9E3779B9) + jnp.uint32(0x85EBCA6B)
    b1 = _fmix32((pair * jnp.uint32(2)) ^ key)
    b2 = _fmix32((pair * jnp.uint32(2) + jnp.uint32(1)) ^ key)

    u1 = 1.0 - _bits_to_unit(b1)       # (0, 1] -> log() is safe
    u2 = _bits_to_unit(b2)             # [0, 1)

    # Box-Muller, using BOTH outputs: 4 EUP ops per 2 normals.
    r = jnp.sqrt(-2.0 * jnp.log(u1))
    theta = (2.0 * jnp.pi) * u2
    z = jnp.concatenate([r * jnp.cos(theta), r * jnp.sin(theta)], axis=0)

    x = x_ref[...].astype(jnp.float32)
    o_ref[...] = (x + jnp.float32(sigma) * z).astype(o_ref.dtype)


def noise_layer(data, seed, *, use_noise=True, sigma=0.2, donate_input=False):
    """JAX/Pallas equivalent of NoiseLayer.forward."""
    if not use_noise:
        return data

    orig_shape = data.shape
    dtype = data.dtype

    flat = data.reshape(-1)
    n = flat.shape[0]
    rows = pl.cdiv(n, LANES)
    padded_rows = pl.cdiv(rows, SUBLANE) * SUBLANE  # sublane-aligned, even
    padded_n = padded_rows * LANES
    if padded_n != n:                                # no-op for aligned shapes
        flat = jnp.pad(flat, (0, padded_n - n))
    x2d = flat.reshape(padded_rows, LANES)

    block_rows = min(padded_rows, MAX_BLOCK_ROWS)    # multiple of 8 by construction
    grid = (pl.cdiv(padded_rows, block_rows),)

    seed_arr = jnp.asarray([seed], dtype=jnp.int32)

    # Only alias the input to the output if the caller no longer needs `data`.
    io_aliases = {1: 0} if donate_input else {}

    out2d = pl.pallas_call(
        functools.partial(_noise_kernel, sigma=sigma),
        out_shape=jax.ShapeDtypeStruct((padded_rows, LANES), dtype),
        grid_spec=pltpu.PrefetchScalarGridSpec(
            num_scalar_prefetch=1,
            grid=grid,
            in_specs=[pl.BlockSpec((block_rows, LANES), lambda i, s: (i, 0))],
            out_specs=pl.BlockSpec((block_rows, LANES), lambda i, s: (i, 0)),
        ),
        compiler_params=pltpu.CompilerParams(
            dimension_semantics=("parallel",)),
        input_output_aliases=io_aliases,
    )(seed_arr, x2d)

    if padded_n != n:
        return out2d.reshape(-1)[:n].reshape(orig_shape)
    return out2d.reshape(orig_shape)


if __name__ == "__main__":
    key = jax.random.PRNGKey(0)
    # NCHW input, small shapes
    x = jax.random.normal(key, (2, 4, 16, 16), dtype=jnp.float32)

    sigma = 0.2
    y = noise_layer(x, seed=0, use_noise=True, sigma=sigma)
    y = jax.block_until_ready(y)

    # basic sanity checks
    assert y.shape == x.shape and y.dtype == x.dtype
    noise = (y - x) / sigma
    assert bool(jnp.all(jnp.isfinite(noise)))
    # noise should be roughly standard normal (loose bounds on 2048 samples)
    assert abs(float(jnp.mean(noise))) < 0.2
    assert 0.7 < float(jnp.std(noise)) < 1.3

    # a different seed gives a different realization
    y2 = jax.block_until_ready(noise_layer(x, seed=1, use_noise=True, sigma=sigma))
    assert not bool(jnp.array_equal(y2, y))

    # use_noise=False path is identity
    y_id = jax.block_until_ready(noise_layer(x, seed=0, use_noise=False))
    assert bool(jnp.array_equal(y_id, x))

    print("KERNEL_OK")
</pallas_src>

<mosaic_0001>
module attributes {stable_mosaic.version = 11 : i64} {
  func.func @_noise_kernel(%arg0: i32, %arg1: memref<1xi32, #tpu.memory_space<smem>>, %arg2: memref<16x128xf32, #tpu.memory_space<vmem>>, %arg3: memref<16x128xf32, #tpu.memory_space<vmem>>) attributes {dimension_semantics = [#tpu.dimension_semantics<parallel>], iteration_bounds = array<i64: 1>, scalar_prefetch = 1 : i64, scratch_operands = 0 : i64, tpu.core_type = #tpu.core_type<tc>, window_params = [{transform_indices = @transform_0, window_bounds = array<i64: 16, 128>}, {transform_indices = @transform_1, window_bounds = array<i64: 16, 128>}]} {
    %0 = tpu.iota {dimensions = array<i32: 0>} : vector<8x128xi32>
    %1 = tpu.iota {dimensions = array<i32: 1>} : vector<8x128xi32>
    %c8_i32 = arith.constant 8 : i32
    %2 = arith.muli %arg0, %c8_i32 : i32
    %3 = vector.broadcast %2 : i32 to vector<8x128xi32>
    %4 = arith.addi %3, %0 : vector<8x128xi32>
    %c128_i32 = arith.constant 128 : i32
    %5 = vector.broadcast %c128_i32 : i32 to vector<8x128xi32>
    %6 = arith.muli %4, %5 : vector<8x128xi32>
    %7 = arith.addi %6, %1 : vector<8x128xi32>
    %c0 = arith.constant 0 : index
    %8 = memref.load %arg1[%c0] : memref<1xi32, #tpu.memory_space<smem>>
    %c-1640531527_i32 = arith.constant -1640531527 : i32
    %9 = arith.muli %8, %c-1640531527_i32 : i32
    %c-2048144789_i32 = arith.constant -2048144789 : i32
    %10 = arith.addi %9, %c-2048144789_i32 : i32
    %c2_i32 = arith.constant 2 : i32
    %11 = vector.broadcast %c2_i32 : i32 to vector<8x128xi32>
    %12 = arith.muli %7, %11 : vector<8x128xi32>
    %13 = vector.broadcast %10 : i32 to vector<8x128xi32>
    %14 = arith.xori %12, %13 : vector<8x128xi32>
    %c16_i32 = arith.constant 16 : i32
    %15 = vector.broadcast %c16_i32 : i32 to vector<8x128xi32>
    %16 = arith.shrui %14, %15 : vector<8x128xi32>
    %17 = arith.xori %14, %16 : vector<8x128xi32>
    %c-2048144789_i32_0 = arith.constant -2048144789 : i32
    %18 = vector.broadcast %c-2048144789_i32_0 : i32 to vector<8x128xi32>
    %19 = arith.muli %17, %18 : vector<8x128xi32>
    %c13_i32 = arith.constant 13 : i32
    %20 = vector.broadcast %c13_i32 : i32 to vector<8x128xi32>
    %21 = arith.shrui %19, %20 : vector<8x128xi32>
    %22 = arith.xori %19, %21 : vector<8x128xi32>
    %c-1028477387_i32 = arith.constant -1028477387 : i32
    %23 = vector.broadcast %c-1028477387_i32 : i32 to vector<8x128xi32>
    %24 = arith.muli %22, %23 : vector<8x128xi32>
    %c16_i32_1 = arith.constant 16 : i32
    %25 = vector.broadcast %c16_i32_1 : i32 to vector<8x128xi32>
    %26 = arith.shrui %24, %25 : vector<8x128xi32>
    %27 = arith.xori %24, %26 : vector<8x128xi32>
    %c2_i32_2 = arith.constant 2 : i32
    %28 = vector.broadcast %c2_i32_2 : i32 to vector<8x128xi32>
    %29 = arith.muli %7, %28 : vector<8x128xi32>
    %c1_i32 = arith.constant 1 : i32
    %30 = vector.broadcast %c1_i32 : i32 to vector<8x128xi32>
    %31 = arith.addi %29, %30 : vector<8x128xi32>
    %32 = vector.broadcast %10 : i32 to vector<8x128xi32>
    %33 = arith.xori %31, %32 : vector<8x128xi32>
    %c16_i32_3 = arith.constant 16 : i32
    %34 = vector.broadcast %c16_i32_3 : i32 to vector<8x128xi32>
    %35 = arith.shrui %33, %34 : vector<8x128xi32>
    %36 = arith.xori %33, %35 : vector<8x128xi32>
    %c-2048144789_i32_4 = arith.constant -2048144789 : i32
    %37 = vector.broadcast %c-2048144789_i32_4 : i32 to vector<8x128xi32>
    %38 = arith.muli %36, %37 : vector<8x128xi32>
    %c13_i32_5 = arith.constant 13 : i32
    %39 = vector.broadcast %c13_i32_5 : i32 to vector<8x128xi32>
    %40 = arith.shrui %38, %39 : vector<8x128xi32>
    %41 = arith.xori %38, %40 : vector<8x128xi32>
    %c-1028477387_i32_6 = arith.constant -1028477387 : i32
    %42 = vector.broadcast %c-1028477387_i32_6 : i32 to vector<8x128xi32>
    %43 = arith.muli %41, %42 : vector<8x128xi32>
    %c16_i32_7 = arith.constant 16 : i32
    %44 = vector.broadcast %c16_i32_7 : i32 to vector<8x128xi32>
    %45 = arith.shrui %43, %44 : vector<8x128xi32>
    %46 = arith.xori %43, %45 : vector<8x128xi32>
    %c9_i32 = arith.constant 9 : i32
    %47 = vector.broadcast %c9_i32 : i32 to vector<8x128xi32>
    %48 = arith.shrui %27, %47 : vector<8x128xi32>
    %c1065353216_i32 = arith.constant 1065353216 : i32
    %49 = vector.broadcast %c1065353216_i32 : i32 to vector<8x128xi32>
    %50 = arith.ori %48, %49 : vector<8x128xi32>
    %51 = tpu.bitcast %50 : vector<8x128xi32> -> vector<8x128xf32>
    %cst = arith.constant 1.000000e+00 : f32
    %52 = vector.broadcast %cst : f32 to vector<8x128xf32>
    %53 = arith.subf %51, %52 : vector<8x128xf32>
    %cst_8 = arith.constant 1.000000e+00 : f32
    %54 = vector.broadcast %cst_8 : f32 to vector<8x128xf32>
    %55 = arith.subf %54, %53 : vector<8x128xf32>
    %c9_i32_9 = arith.constant 9 : i32
    %56 = vector.broadcast %c9_i32_9 : i32 to vector<8x128xi32>
    %57 = arith.shrui %46, %56 : vector<8x128xi32>
    %c1065353216_i32_10 = arith.constant 1065353216 : i32
    %58 = vector.broadcast %c1065353216_i32_10 : i32 to vector<8x128xi32>
    %59 = arith.ori %57, %58 : vector<8x128xi32>
    %60 = tpu.bitcast %59 : vector<8x128xi32> -> vector<8x128xf32>
    %cst_11 = arith.constant 1.000000e+00 : f32
    %61 = vector.broadcast %cst_11 : f32 to vector<8x128xf32>
    %62 = arith.subf %60, %61 : vector<8x128xf32>
    %63 = math.log %55 : vector<8x128xf32>
    %cst_12 = arith.constant -2.000000e+00 : f32
    %64 = vector.broadcast %cst_12 : f32 to vector<8x128xf32>
    %65 = arith.mulf %64, %63 : vector<8x128xf32>
    %66 = math.sqrt %65 : vector<8x128xf32>
    %cst_13 = arith.constant 6.28318548 : f32
    %67 = vector.broadcast %cst_13 : f32 to vector<8x128xf32>
    %68 = arith.mulf %67, %62 : vector<8x128xf32>
    %69 = math.cos %68 : vector<8x128xf32>
    %70 = arith.mulf %66, %69 : vector<8x128xf32>
    %71 = math.sin %68 : vector<8x128xf32>
    %72 = arith.mulf %66, %71 : vector<8x128xf32>
    %73 = tpu.concatenate %70, %72 in 0 : vector<8x128xf32>, vector<8x128xf32> -> vector<16x128xf32>
    %c0_14 = arith.constant 0 : index
    %c0_15 = arith.constant 0 : index
    %74 = vector.load %arg2[%c0_14, %c0_15] : memref<16x128xf32, #tpu.memory_space<vmem>>, vector<16x128xf32>
    %cst_16 = arith.constant 2.000000e-01 : f32
    %75 = vector.broadcast %cst_16 : f32 to vector<16x128xf32>
    %76 = arith.mulf %75, %73 : vector<16x128xf32>
    %77 = arith.addf %74, %76 : vector<16x128xf32>
    %c0_17 = arith.constant 0 : index
    %c0_18 = arith.constant 0 : index
    %78 = vector.load %arg3[%c0_17, %c0_18] : memref<16x128xf32, #tpu.memory_space<vmem>>, vector<16x128xf32>
    tpu.vector_store %arg3[%c0_17, %c0_18], %77 {strides = array<i32>} : memref<16x128xf32, #tpu.memory_space<vmem>>, vector<16x128xf32>,
    return
  }
  func.func @transform_0(%arg0: i32, %arg1: memref<1xi32, #tpu.memory_space<smem>>) -> (i32, i32) {
    %c0_i32 = arith.constant 0 : i32
    %c0_i32_0 = arith.constant 0 : i32
    return %arg0, %c0_i32 : i32, i32
  }
  func.func @transform_1(%arg0: i32, %arg1: memref<1xi32, #tpu.memory_space<smem>>) -> (i32, i32) {
    %c0_i32 = arith.constant 0 : i32
    %c0_i32_0 = arith.constant 0 : i32
    return %arg0, %c0_i32 : i32, i32
  }
}

</mosaic_0001>

<llo_original>
// kernel: tpu_custom_call.1
$region0: #{tpu_custom_call.1}
  #allocation0 [shape = 'u32[]', space=smem, size = 0x4, offset = 0x4, fixed_abs, tag = 'smem constant byte address 0x4 - core index']
  #allocation1 [shape = 'u32[144,128]{1,0:T(1,128)}', space=vmem, size = 0x12000, scoped, tag = 'internal scratch']
  #allocation2 [shape = 's32[1]{0}', space=sflag, size = 0x4, scoped, tag = 'scoped memory for tpu_custom_call.1']
  #allocation3 [shape = 's32[1]{0:T(128)S(6)}', space=smem, size = 0x200, scoped, tag = 'prefetched SMEM operand 0']
  %s0 = inlined_call_operand.<no memory space> [shape: s32[1], index: 0, kind: input, shape index: {}]
  %s1 = inlined_call_operand.hbm [shape: f32[16,128], index: 1, kind: input, shape index: {}]
  %s2 = inlined_call_operand.hbm [shape: f32[16,128], index: 2, kind: output, shape index: {}]
  %s3 = sld [smem:[#allocation0]]
  $region18: #{tpu_custom_call.1} parent=0
    _
  %s5 = ssub.s32 1, %s3
  %s6 = scalar_select 0, %s5, %s3
  %7 = sst [smem:[#allocation3]] %s0
  $region1: #{tpu_custom_call.1} parent=0
    #allocation4 [shape = 'u8[8192]{0}', space=vmem, size = 0x2000, scoped, tag = 'input window, operand 1, single buffered']
    #allocation5 [shape = 's32[1]{0}', space=sflag, size = 0x4, scoped, tag = 'scoped memory for tpu_custom_call.1']
    #allocation6 [shape = 's32[1]{0}', space=sflag, size = 0x4, scoped, tag = 'scoped memory for tpu_custom_call.1']
    #allocation7 [shape = 'u8[8192]{0}', space=vmem, size = 0x2000, scoped, tag = 'output window, operand 0, single buffered']
    %8 = vsyncpa [#allocation5], 0
    %9 = vsyncpa [#allocation6], 0
    // Predicated region
    $region2: #{tpu_custom_call.1} parent=1 // pred_check
      _
    $region3: #{tpu_custom_call.1} parent=1 // pred_check_branch
      %11 = sbr.rel (0) target = $region5
    $region4: #{tpu_custom_call.1} parent=1 // pred_region
      %s13 = ssub.s32 256, 256
      %14 = vsyncadd [#allocation5], %s13
      %s15 = sshll.u32 [#allocation4], 4
      %s16 = int_to_ptr.vmem [resolvable:$true] %s15
      %21 = dma.hbm_to_vmem [thread:$0]  %s1, 256, %s16, [#allocation5], 128, 128, 8
    $region5: #{tpu_custom_call.1} parent=1 // pred_fallthru
      _
    // Predicated region
    $region6: #{tpu_custom_call.1} parent=1 // pred_check
      _
    $region7: #{tpu_custom_call.1} parent=1 // pred_check_branch
      %23 = sbr.rel (0) target = $region9
    $region8: #{tpu_custom_call.1} parent=1 // pred_region
      %24 = dma.done [#allocation5], 256
    $region9: #{tpu_custom_call.1} parent=1 // pred_fallthru
      _
    %v25 = vlaneseq
    %v26 = vshrl.u32 %v25, 7
    %v27 = vlaneseq
    %v28 = vand.u32 %v27, 127
    %s29 = smul.u32 0, 8
    %v30 = vstv %s29
    %v31 = vadd.s32 %v30, %v26
    %v32 = vmul.u32 %v31, 128
    %v33 = vadd.s32 %v32, %v28
    %s34 = sld [smem:[#allocation3]]
    %s35 = smul.u32 %s34, 2654435769
    %s36 = sadd.s32 %s35, 2246822507
    %v37 = vmul.u32 %v33, 2
    %v38 = vstv %s36
    %v39 = vxor.u32 %v37, %v38
    %v40 = vshrl.u32 %v39, 16
    %v41 = vxor.u32 %v39, %v40
    %v42 = vmul.u32 %v41, 2246822507
    %v43 = vshrl.u32 %v42, 13
    %v44 = vxor.u32 %v42, %v43
    %v45 = vmul.u32 %v44, 3266489909
    %v46 = vshrl.u32 %v45, 16
    %v47 = vxor.u32 %v45, %v46
    %v48 = vadd.s32 %v37, 1
    %v49 = vxor.u32 %v48, %v38
    %v50 = vshrl.u32 %v49, 16
    %v51 = vxor.u32 %v49, %v50
    %v52 = vmul.u32 %v51, 2246822507
    %v53 = vshrl.u32 %v52, 13
    %v54 = vxor.u32 %v52, %v53
    %v55 = vmul.u32 %v54, 3266489909
    %v56 = vshrl.u32 %v55, 16
    %v57 = vxor.u32 %v55, %v56
    %v58 = vshrl.u32 %v47, 9
    %v59 = vor.u32 %v58, 1065353216
    %v61 = vsub.f32 %v59, 1.0
    %v62 = vsub.f32 1.0, %v61
    %v63 = vshrl.u32 %v57, 9
    %v64 = vor.u32 %v63, 1065353216
    %v66 = vsub.f32 %v64, 1.0
    %v67 = vlog2.pop %v62
    %v68 = vmul.f32 %v67, 0.6931472
    %v69 = vmul.f32 %v68, -2.0
    %v70 = vrsqrt.pop %v69
    %v71 = vmul.f32 %v69, %v70
    %vm72 = vcmp.eq.f32.partialorder %v69, inf
    %v73 = vsel %vm72, %v69, %v71
    %vm74 = vcmp.eq.f32.partialorder %v69, 0.0
    %v75 = vand.u32 %v69, 2147483648
    %v76 = vsel %vm74, %v75, %v73
    %v77 = vmul.f32 %v66, 6.2831855
    %v78 = vand.u32 2147483647, %v77
    %vm79 = vcmp.le.f32.partialorder %v78, 0.7853982
    %vm80 = vcmp.lt.s32.totalorder %v77, 0
    %v81 = vand.u32 %v77, 2139095040
    %v82 = vshrl.u32 %v81, 23
    %v83 = vsub.s32 %v82, 127
    %v84 = vand.u32 2147483647, %v77
    %v85 = vand.u32 %v84, 8388607
    %v86 = vor.u32 %v85, 8388608
    %v87 = vsub.s32 0, %v86
    %v88 = vadd.s32 %v83, 1
    %vm89 = vcmp.gt.s32.totalorder %v88, 0
    %v90 = vsel %vm89, %v88, 0
    %v91 = vshrl.u32 %v90, 5
    %v92 = vand.u32 %v90, 31
    %v93 = vsub.s32 32, %v92
    %v94 = vshrl.u32 683565275, %v93
    %v95 = vshll.u32 683565275, %v92
    %v96 = vshrl.u32 2475754826, %v93
    %v97 = vor.u32 %v95, %v96
    %v98 = vshll.u32 2475754826, %v92
    %v99 = vshrl.u32 2131351028, %v93
    %v100 = vor.u32 %v98, %v99
    %v101 = vshll.u32 2131351028, %v92
    %v102 = vshrl.u32 2102212464, %v93
    %v103 = vor.u32 %v101, %v102
    %v104 = vshll.u32 2102212464, %v92
    %v105 = vshrl.u32 920167782, %v93
    %v106 = vor.u32 %v104, %v105
    %v107 = vshll.u32 920167782, %v92
    %v108 = vshrl.u32 1326507024, %v93
    %v109 = vor.u32 %v107, %v108
    %vm110 = vcmp.lt.s32.totalorder %v91, 1
    %vm111 = vcmp.lt.s32.totalorder %v91, 2
    %vm112 = vcmp.lt.s32.totalorder %v91, 3
    %vm113 = vcmp.lt.s32.totalorder %v91, 4
    %v114 = vsel %vm110, %v94, %v97
    %v115 = vsel %vm113, %v103, 2102212464
    %v116 = vsel %vm112, %v100, %v115
    %v117 = vsel %vm111, %v114, %v116
    %v118 = vsel %vm110, %v97, %v100
    %v119 = vsel %vm113, %v106, 920167782
    %v120 = vsel %vm112, %v103, %v119
    %v121 = vsel %vm111, %v118, %v120
    %v122 = vsel %vm110, %v100, %v103
    %v123 = vsel %vm113, %v109, 1326507024
    %v124 = vsel %vm112, %v106, %v123
    %v125 = vsel %vm111, %v122, %v124
    %v126 = vshll.u32 %v86, 8
    %v127 = vmul.u32.u64.compose %v126, %v125
    %v128 = vextract.low.u32 %v127
    %v129 = vextract.high.u32 %v127
    %v130 = vmul.u32.u64.compose %v126, %v121
    %v131 = vextract.low.u32 %v130
    %v132 = vextract.high.u32 %v130
    %v133 = vmul.u32 %v126, %v117
    %v134 = vadd.s32 %v129, %v131
    %vm135 = vc.u32 %v129, %v131
    %v136 = vadd.s32 %v132, 1
    %v137 = vsel %vm135, %v136, %v132
    %v138 = vadd.s32 %v133, %v137
    %v139 = vadd.s32 %v138, 536870912
    %v140 = vshrl.u32 %v139, 30
    %v141 = vshll.u32 %v140, 30
    %v142 = vsub.s32 %v138, %v141
    %vm143 = vcmp.lt.s32.totalorder %v142, 0
    %v144 = vsub.s32 0, %v142
    %v145 = vsel %vm143, %v144, %v142
    %v146 = vclz %v145
    %v147 = vsub.s32 %v146, 2
    %vm148 = vcmp.gt.s32.totalorder 0, %v147
    %v149 = vsel %vm148, 0, %v147
    %v150 = vsub.s32 32, %v149
    %v151 = vshll.u32 %v142, %v149
    %v152 = vshrl.u32 %v134, %v150
    %v153 = vor.u32 %v151, %v152
    %v154 = vsub.s32 4294967266, %v149
    %v155 = vadd.s32 %v154, 127
    %v156 = vshll.u32 %v155, 23
    %v157 = vor.u32 4788187, %v156
    %v158 = vand.u32 2147483647, %v157
    %v160 = vcvt.s32.f32 %v153
    %v161 = vmul.f32 %v160, %v158
    %v162 = vxor.u32 %v161, 2147483648
    %v163 = vsel %vm80, %v162, %v161
    %v164 = vsub.s32 4, %v140
    %v165 = vsel %vm80, %v164, %v140
    %v166 = vsel %vm79, %v77, %v163
    %v167 = vsel %vm79, 0, %v165
    %v168 = vcosq.f32.pop %v166
    %v169 = vsinq.f32.pop %v166
    %vm170 = vweird.f32 %v77
    %v171 = vand.u32 %v167, 3
    %vm172 = vcmp.lt.s32.totalorder %v171, 2
    %vm173 = vcmp.eq.s32.totalorder %v171, 0
    %v174 = vxor.u32 %v169, 2147483648
    %v175 = vsel %vm173, %v168, %v174
    %vm176 = vcmp.eq.s32.totalorder %v171, 2
    %v177 = vxor.u32 %v168, 2147483648
    %v178 = vsel %vm176, %v177, %v169
    %v179 = vsel %vm172, %v175, %v178
    %v180 = vsel %vm170, nan, %v179
    %v181 = vmul.f32 %v76, %v180
    %v182 = vand.u32 2147483647, %v77
    %vm183 = vcmp.le.f32.partialorder %v182, 0.7853982
    %vm184 = vcmp.lt.s32.totalorder %v77, 0
    %v185 = vand.u32 %v77, 2139095040
    %v186 = vshrl.u32 %v185, 23
    %v187 = vsub.s32 %v186, 127
    %v188 = vand.u32 2147483647, %v77
    %v189 = vand.u32 %v188, 8388607
    %v190 = vor.u32 %v189, 8388608
    %v191 = vsub.s32 0, %v190
    %v192 = vadd.s32 %v187, 1
    %vm193 = vcmp.gt.s32.totalorder %v192, 0
    %v194 = vsel %vm193, %v192, 0
    %v195 = vshrl.u32 %v194, 5
    %v196 = vand.u32 %v194, 31
    %v197 = vsub.s32 32, %v196
    %v198 = vshrl.u32 683565275, %v197
    %v199 = vshll.u32 683565275, %v196
    %v200 = vshrl.u32 2475754826, %v197
    %v201 = vor.u32 %v199, %v200
    %v202 = vshll.u32 2475754826, %v196
    %v203 = vshrl.u32 2131351028, %v197
    %v204 = vor.u32 %v202, %v203
    %v205 = vshll.u32 2131351028, %v196
    %v206 = vshrl.u32 2102212464, %v197
    %v207 = vor.u32 %v205, %v206
    %v208 = vshll.u32 2102212464, %v196
    %v209 = vshrl.u32 920167782, %v197
    %v210 = vor.u32 %v208, %v209
    %v211 = vshll.u32 920167782, %v196
    %v212 = vshrl.u32 1326507024, %v197
    %v213 = vor.u32 %v211, %v212
    %vm214 = vcmp.lt.s32.totalorder %v195, 1
    %vm215 = vcmp.lt.s32.totalorder %v195, 2
    %vm216 = vcmp.lt.s32.totalorder %v195, 3
    %vm217 = vcmp.lt.s32.totalorder %v195, 4
    %v218 = vsel %vm214, %v198, %v201
    %v219 = vsel %vm217, %v207, 2102212464
    %v220 = vsel %vm216, %v204, %v219
    %v221 = vsel %vm215, %v218, %v220
    %v222 = vsel %vm214, %v201, %v204
    %v223 = vsel %vm217, %v210, 920167782
    %v224 = vsel %vm216, %v207, %v223
    %v225 = vsel %vm215, %v222, %v224
    %v226 = vsel %vm214, %v204, %v207
    %v227 = vsel %vm217, %v213, 1326507024
    %v228 = vsel %vm216, %v210, %v227
    %v229 = vsel %vm215, %v226, %v228
    %v230 = vshll.u32 %v190, 8
    %v231 = vmul.u32.u64.compose %v230, %v229
    %v232 = vextract.low.u32 %v231
    %v233 = vextract.high.u32 %v231
    %v234 = vmul.u32.u64.compose %v230, %v225
    %v235 = vextract.low.u32 %v234
    %v236 = vextract.high.u32 %v234
    %v237 = vmul.u32 %v230, %v221
    %v238 = vadd.s32 %v233, %v235
    %vm239 = vc.u32 %v233, %v235
    %v240 = vadd.s32 %v236, 1
    %v241 = vsel %vm239, %v240, %v236
    %v242 = vadd.s32 %v237, %v241
    %v243 = vadd.s32 %v242, 536870912
    %v244 = vshrl.u32 %v243, 30
    %v245 = vshll.u32 %v244, 30
    %v246 = vsub.s32 %v242, %v245
    %vm247 = vcmp.lt.s32.totalorder %v246, 0
    %v248 = vsub.s32 0, %v246
    %v249 = vsel %vm247, %v248, %v246
    %v250 = vclz %v249
    %v251 = vsub.s32 %v250, 2
    %vm252 = vcmp.gt.s32.totalorder 0, %v251
    %v253 = vsel %vm252, 0, %v251
    %v254 = vsub.s32 32, %v253
    %v255 = vshll.u32 %v246, %v253
    %v256 = vshrl.u32 %v238, %v254
    %v257 = vor.u32 %v255, %v256
    %v258 = vsub.s32 4294967266, %v253
    %v259 = vadd.s32 %v258, 127
    %v260 = vshll.u32 %v259, 23
    %v261 = vor.u32 4788187, %v260
    %v262 = vand.u32 2147483647, %v261
    %v264 = vcvt.s32.f32 %v257
    %v265 = vmul.f32 %v264, %v262
    %v266 = vxor.u32 %v265, 2147483648
    %v267 = vsel %vm184, %v266, %v265
    %v268 = vsub.s32 4, %v244
    %v269 = vsel %vm184, %v268, %v244
    %v270 = vsel %vm183, %v77, %v267
    %v271 = vsel %vm183, 0, %v269
    %v272 = vcosq.f32.pop %v270
    %v273 = vsinq.f32.pop %v270
    %vm274 = vweird.f32 %v77
    %v275 = vadd.s32 %v271, 3
    %v276 = vand.u32 %v275, 3
    %vm277 = vcmp.lt.s32.totalorder %v276, 2
    %vm278 = vcmp.eq.s32.totalorder %v276, 0
    %v279 = vxor.u32 %v273, 2147483648
    %v280 = vsel %vm278, %v272, %v279
    %vm281 = vcmp.eq.s32.totalorder %v276, 2
    %v282 = vxor.u32 %v272, 2147483648
    %v283 = vsel %vm281, %v282, %v273
    %v284 = vsel %vm277, %v280, %v283
    %v285 = vsel %vm274, nan, %v284
    %v286 = vmul.f32 %v76, %v285
    %v287 = vld [vmem:[#allocation4] sm:$0xff]
    %v288 = vld [vmem:[#allocation4 + $0x8] sm:$0xff]
    %v289 = vmul.f32 %v181, 0.2
    %v290 = vmul.f32 %v286, 0.2
    %v291 = vadd.f32 %v287, %v289
    %v292 = vadd.f32 %v288, %v290
    %293 = vst [vmem:[#allocation7] sm:$0xff] %v291
    %294 = vst [vmem:[#allocation7 + $0x8] sm:$0xff] %v292
    // Predicated region
    $region10: #{tpu_custom_call.1} parent=1 // pred_check
      _
    $region11: #{tpu_custom_call.1} parent=1 // pred_check_branch
      %296 = sbr.rel (0) target = $region13
    $region12: #{tpu_custom_call.1} parent=1 // pred_region
      %s298 = ssub.s32 256, 256
      %299 = vsyncadd [#allocation6], %s298
      %s300 = sshll.u32 [#allocation7], 4
      %s301 = int_to_ptr.vmem [resolvable:$true] %s300
      %306 = dma.vmem_to_hbm [thread:$0]  %s301, 256, %s2, [#allocation6], 128, 128, 8
    $region13: #{tpu_custom_call.1} parent=1 // pred_fallthru
      _
    // Predicated region
    $region14: #{tpu_custom_call.1} parent=1 // pred_check
      _
    $region15: #{tpu_custom_call.1} parent=1 // pred_check_branch
      %308 = sbr.rel (0) target = $region17
    $region16: #{tpu_custom_call.1} parent=1 // pred_region
      %309 = dma.done [#allocation6], 256
    $region17: #{tpu_custom_call.1} parent=1 // pred_fallthru
      _
    %310 = vsyncpa [#allocation5], 1
    %311 = vsyncpa [#allocation6], 1

</llo_original>
